<compile_context>
chip_gen: v7x
topology: tpu7x:2x2x1
jax: 0.10.0
libtpu: 0.0.40
codegen_flags: <defaults>
</compile_context>

<pallas_src>
import functools

import jax
import jax.numpy as jnp
from jax.experimental import pallas as pl
from jax.experimental.pallas import tpu as pltpu

BN_EPS = 1e-5
LANE = 128


# ---------------------------------------------------------------------------
# kernels
# ---------------------------------------------------------------------------
def _fused_kernel(x_ref, w1_ref, b1_ref, gamma_ref, beta_ref, w2_ref, b2_ref,
                  o_ref, *, inv_count):
    """Whole problem resident in VMEM: Linear -> BN (batch stats) -> ReLU -> Linear."""
    h = jnp.dot(x_ref[...], w1_ref[...], preferred_element_type=jnp.float32)
    h = h + b1_ref[...]

    # Batch statistics in f32; cross-sublane reduce runs on the XLU.
    bsum = jnp.sum(h, axis=0, keepdims=True)
    bsumsq = jnp.sum(h * h, axis=0, keepdims=True)
    mean = bsum * inv_count
    var = jnp.maximum(bsumsq * inv_count - mean * mean, 0.0)   # biased (train mode)

    # Fold the BN affine into per-feature scale/shift rows.
    scale = gamma_ref[...] * jax.lax.rsqrt(var + BN_EPS)
    shift = beta_ref[...] - mean * scale

    h_act = jnp.maximum(h * scale + shift, 0.0).astype(jnp.bfloat16)

    out = jnp.dot(h_act, w2_ref[...], preferred_element_type=jnp.float32)
    o_ref[...] = (out + b2_ref[...]).astype(o_ref.dtype)


def _stats_kernel(x_ref, w1_ref, b1_ref, sum_ref, sumsq_ref, *, batch, needs_mask):
    """Pass 1 (stats only): per-batch-tile partial sum / sum-of-squares of
    h = x@W1 + b1.  h is NOT written to HBM -- it is recomputed in pass 2."""
    h = jnp.dot(x_ref[...], w1_ref[...], preferred_element_type=jnp.float32)
    h = h + b1_ref[...]

    if needs_mask:   # remove the contribution of zero-padded batch rows
        rows = pl.program_id(0) * h.shape[0] + jax.lax.broadcasted_iota(
            jnp.int32, h.shape, 0)
        h = jnp.where(rows < batch, h, 0.0)

    s = jnp.sum(h, axis=0, keepdims=True)        # (1, H)
    sq = jnp.sum(h * h, axis=0, keepdims=True)   # (1, H)
    # (8, H) sublane-aligned output block (all 8 rows identical; the wrapper
    # reads row 0).  Keeps every BlockSpec (8, 128)-tileable while letting the
    # batch axis stay "parallel" (shards across v7x's two TensorCores).
    sum_ref[...] = jnp.broadcast_to(s, sum_ref.shape)
    sumsq_ref[...] = jnp.broadcast_to(sq, sumsq_ref.shape)


def _bn_relu_linear_kernel(sum_ref, sumsq_ref, x_ref, w1_ref, b1_ref,
                           gamma_ref, beta_ref, w2_ref, b2_ref, o_ref, *,
                           inv_count):
    """Pass 2: recompute h = x@W1 + b1, normalize with the GLOBAL batch stats
    (folded into scale/shift), ReLU, second Linear."""
    mean = sum_ref[...] * inv_count
    var = jnp.maximum(sumsq_ref[...] * inv_count - mean * mean, 0.0)
    scale = gamma_ref[...] * jax.lax.rsqrt(var + BN_EPS)
    shift = beta_ref[...] - mean * scale

    h = jnp.dot(x_ref[...], w1_ref[...], preferred_element_type=jnp.float32)
    h = h + b1_ref[...]
    h_act = jnp.maximum(h * scale + shift, 0.0).astype(jnp.bfloat16)

    out = jnp.dot(h_act, w2_ref[...], preferred_element_type=jnp.float32)
    o_ref[...] = (out + b2_ref[...]).astype(o_ref.dtype)


# ---------------------------------------------------------------------------
# wrapper helpers
# ---------------------------------------------------------------------------
def _pad_axis(a, axis, mult):
    pad = (-a.shape[axis]) % mult
    if pad == 0:
        return a
    widths = [(0, 0)] * a.ndim
    widths[axis] = (0, pad)
    return jnp.pad(a, widths)


def _pad_rows_to(a, rows):
    pad = rows - a.shape[0]
    if pad <= 0:
        return a
    return jnp.pad(a, ((0, pad), (0, 0)))


def _round_up(n, m):
    return ((n + m - 1) // m) * m


def _vmem_limit_bytes():
    """Per-generation scoped-VMEM limit (well above the 16/32 MiB defaults)."""
    try:
        cap = int(pltpu.get_tpu_info().vmem_capacity_bytes)
    except Exception:
        cap = 0
    if cap <= 0:
        cap = 64 * 1024 * 1024          # conservative fallback: v7x per-core VMEM
    # ~96 MiB on v5e/v6e (128 MiB physical), ~48 MiB on v7x (64 MiB physical)
    return min((cap * 3) // 4, 100 * 1024 * 1024)


def _weight_bytes(c_pad, h_pad, p_pad):
    # single-buffered residents: bf16 W1/W2 + f32 rows (b1, gamma, beta, sum,
    # sumsq) + f32 b2
    return 2 * c_pad * h_pad + 2 * h_pad * p_pad + 4 * (5 * h_pad + p_pad)


def _tile_bytes(tb, c_pad, h_pad, p_pad):
    # double-buffered bf16 x tile + f32 out tile, plus in-kernel f32 h /
    # bf16 act / transient scratch
    return 2 * (2 * tb * c_pad) + 2 * (4 * tb * p_pad) + tb * (10 * h_pad)


def _pick_batch_tile(batch, c_pad, h_pad, p_pad, budget):
    """Largest batch tile whose working set fits the budget.  Never falls back
    to a full-batch block; tiles are >=16 rows (bf16 sublane packing) and the
    wrapper pads the batch to a multiple of the tile."""
    resident = _weight_bytes(c_pad, h_pad, p_pad)
    cap = max(16, _round_up(batch, 16))
    for tb in (2048, 1024, 512, 256, 128, 64, 32, 16):
        if tb <= cap and resident + _tile_bytes(tb, c_pad, h_pad, p_pad) <= budget:
            return tb
    return 16


# ---------------------------------------------------------------------------
# wrapper
# ---------------------------------------------------------------------------
def mlp_head(x, w1, b1, gamma, beta, w2, b2, *, two_pass=None,
             out_dtype=jnp.float32):
    """Forward of MLPHead.  x:(B,C_in)  w1:(C_in,H)  b1/gamma/beta:(1,H)
    w2:(H,P)  b2:(1,P)  ->  (B,P) in `out_dtype` (pass bf16 to halve output
    write traffic if the consumer accepts it)."""
    batch = x.shape[0]
    proj = w2.shape[1]

    # Lane-dense zero padding of the feature dims (exact for this op: padded
    # hidden units have sum=sumsq=0 and gamma=0 -> scale=shift=0 -> ReLU(0)=0,
    # multiplied by zero W2 rows).
    xp = _pad_axis(x.astype(jnp.bfloat16), 1, LANE)
    w1p = _pad_axis(_pad_axis(w1, 0, LANE), 1, LANE).astype(jnp.bfloat16)
    b1p = _pad_axis(b1.astype(jnp.float32), 1, LANE)
    gp = _pad_axis(gamma.astype(jnp.float32), 1, LANE)
    bp = _pad_axis(beta.astype(jnp.float32), 1, LANE)
    w2p = _pad_axis(_pad_axis(w2, 0, LANE), 1, LANE).astype(jnp.bfloat16)
    b2p = _pad_axis(b2.astype(jnp.float32), 1, LANE)

    c_pad, h_pad, p_pad = xp.shape[1], w1p.shape[1], w2p.shape[1]
    inv_count = 1.0 / batch
    osz = jnp.dtype(out_dtype).itemsize

    vmem_limit = _vmem_limit_bytes()
    budget = vmem_limit // 2            # headroom for compiler scratch

    if two_pass is None:
        fused_bytes = _weight_bytes(c_pad, h_pad, p_pad) + batch * (
            2 * c_pad + 10 * h_pad + osz * p_pad)
        two_pass = fused_bytes > budget

    # ---------------- single fused call (small / medium problems) ----------------
    if not two_pass:
        vmem = pl.BlockSpec(memory_space=pltpu.MemorySpace.VMEM)
        cost = pl.CostEstimate(
            flops=2 * batch * c_pad * h_pad + 2 * batch * h_pad * p_pad
            + 10 * batch * h_pad,
            transcendentals=h_pad,
            bytes_accessed=2 * batch * c_pad + 2 * c_pad * h_pad
            + 2 * h_pad * p_pad + 4 * (3 * h_pad + p_pad) + osz * batch * p_pad,
        )
        out_p = pl.pallas_call(
            functools.partial(_fused_kernel, inv_count=inv_count),
            out_shape=jax.ShapeDtypeStruct((batch, p_pad), out_dtype),
            in_specs=[vmem] * 7,
            out_specs=vmem,
            compiler_params=pltpu.CompilerParams(vmem_limit_bytes=vmem_limit),
            cost_estimate=cost,
        )(xp, w1p, b1p, gp, bp, w2p, b2p)
        return out_p[:, :proj]

    # ------------- two-pass: exact BatchNorm across batch tiles -------------
    tb = _pick_batch_tile(batch, c_pad, h_pad, p_pad, budget)
    b_pad = _round_up(batch, tb)
    nb = b_pad // tb
    xpb = _pad_rows_to(xp, b_pad)
    needs_mask = b_pad != batch

    def _const(shape):   # grid-invariant operand: fetch once, single buffer
        return pl.BlockSpec(shape, lambda i: (0,) * len(shape),
                            pipeline_mode=pl.Buffered(1))

    # Pass 1: stats only (no hidden-activation writeback).
    pass1 = pl.pallas_call(
        functools.partial(_stats_kernel, batch=batch, needs_mask=needs_mask),
        out_shape=(
            jax.ShapeDtypeStruct((nb, 8, h_pad), jnp.float32),   # partial sums
            jax.ShapeDtypeStruct((nb, 8, h_pad), jnp.float32),   # partial sums of squares
        ),
        grid_spec=pltpu.PrefetchScalarGridSpec(
            num_scalar_prefetch=0,
            grid=(nb,),
            in_specs=[
                pl.BlockSpec((tb, c_pad), lambda i: (i, 0)),
                _const((c_pad, h_pad)),
                _const((1, h_pad)),
            ],
            out_specs=(
                pl.BlockSpec((1, 8, h_pad), lambda i: (i, 0, 0)),
                pl.BlockSpec((1, 8, h_pad), lambda i: (i, 0, 0)),
            ),
        ),
        compiler_params=pltpu.CompilerParams(
            dimension_semantics=("parallel",),
            vmem_limit_bytes=vmem_limit),
        cost_estimate=pl.CostEstimate(
            flops=2 * b_pad * c_pad * h_pad + 5 * b_pad * h_pad,
            transcendentals=0,
            bytes_accessed=2 * b_pad * c_pad + 2 * c_pad * h_pad + 4 * h_pad
            + 8 * nb * 8 * h_pad,
        ),
    )
    psum, psumsq = pass1(xpb, w1p, b1p)

    # Tiny XLA reduction of the per-tile partials -> global batch statistics.
    bsum = jnp.sum(psum[:, 0, :], axis=0, keepdims=True)
    bsumsq = jnp.sum(psumsq[:, 0, :], axis=0, keepdims=True)

    # Pass 2: recompute h, folded-affine BN, ReLU, second Linear.
    pass2 = pl.pallas_call(
        functools.partial(_bn_relu_linear_kernel, inv_count=inv_count),
        out_shape=jax.ShapeDtypeStruct((b_pad, p_pad), out_dtype),
        grid_spec=pltpu.PrefetchScalarGridSpec(
            num_scalar_prefetch=0,
            grid=(nb,),
            in_specs=[
                _const((1, h_pad)),                            # global sum
                _const((1, h_pad)),                            # global sum of squares
                pl.BlockSpec((tb, c_pad), lambda i: (i, 0)),   # x tile
                _const((c_pad, h_pad)),                        # w1
                _const((1, h_pad)),                            # b1
                _const((1, h_pad)),                            # gamma
                _const((1, h_pad)),                            # beta
                _const((h_pad, p_pad)),                        # w2
                _const((1, p_pad)),                            # b2
            ],
            out_specs=pl.BlockSpec((tb, p_pad), lambda i: (i, 0)),
        ),
        compiler_params=pltpu.CompilerParams(
            dimension_semantics=("parallel",),
            vmem_limit_bytes=vmem_limit),
        cost_estimate=pl.CostEstimate(
            flops=2 * b_pad * c_pad * h_pad + 2 * b_pad * h_pad * p_pad
            + 6 * b_pad * h_pad,
            transcendentals=nb * h_pad,
            bytes_accessed=2 * b_pad * c_pad + 2 * c_pad * h_pad
            + 2 * h_pad * p_pad + 4 * (6 * h_pad + p_pad) + osz * b_pad * p_pad,
        ),
    )
    out_p = pass2(bsum, bsumsq, xpb, w1p, b1p, gp, bp, w2p, b2p)
    return out_p[:batch, :proj]


# ---------------------------------------------------------------------------
# reference (same precision policy: bf16 into the dots, f32 BN statistics)
# ---------------------------------------------------------------------------
def mlp_head_ref(x, w1, b1, gamma, beta, w2, b2):
    f32 = jnp.float32
    h = jnp.dot(x.astype(jnp.bfloat16), w1.astype(jnp.bfloat16),
                preferred_element_type=f32) + b1.astype(f32)
    mean = jnp.mean(h, axis=0, keepdims=True)
    var = jnp.mean(jnp.square(h - mean), axis=0, keepdims=True)   # biased (train mode)
    h = (h - mean) * jax.lax.rsqrt(var + BN_EPS) * gamma + beta
    h = jnp.maximum(h, 0.0)
    return jnp.dot(h.astype(jnp.bfloat16), w2.astype(jnp.bfloat16),
                   preferred_element_type=f32) + b2


if __name__ == "__main__":
    B, C_IN, HIDDEN, PROJ = 8, 32, 64, 32

    key = jax.random.PRNGKey(0)
    kx, kw1, kb1, kw2, kb2, kx2 = jax.random.split(key, 6)

    x = jax.random.normal(kx, (B, C_IN), dtype=jnp.float32)

    lim1 = 1.0 / jnp.sqrt(C_IN)
    w1 = jax.random.uniform(kw1, (C_IN, HIDDEN), jnp.float32, -lim1, lim1)
    b1 = jax.random.uniform(kb1, (1, HIDDEN), jnp.float32, -lim1, lim1)
    gamma = jnp.ones((1, HIDDEN), jnp.float32)    # BatchNorm1d weight
    beta = jnp.zeros((1, HIDDEN), jnp.float32)    # BatchNorm1d bias
    lim2 = 1.0 / jnp.sqrt(HIDDEN)
    w2 = jax.random.uniform(kw2, (HIDDEN, PROJ), jnp.float32, -lim2, lim2)
    b2 = jax.random.uniform(kb2, (1, PROJ), jnp.float32, -lim2, lim2)

    # 1) small batch -> single fused kernel call.
    out = jax.block_until_ready(mlp_head(x, w1, b1, gamma, beta, w2, b2))
    ref = mlp_head_ref(x, w1, b1, gamma, beta, w2, b2)
    assert out.shape == (B, PROJ)
    assert jnp.allclose(out, ref, atol=2e-2, rtol=2e-2), "fused path mismatch"

    # 2) larger, non-divisible batch -> exercises the two-pass path
    #    (stats-only pass 1 + recompute pass 2, batch padding + stats masking).
    B2 = 200
    x2 = jax.random.normal(kx2, (B2, C_IN), dtype=jnp.float32)
    out2 = jax.block_until_ready(
        mlp_head(x2, w1, b1, gamma, beta, w2, b2, two_pass=True))
    ref2 = mlp_head_ref(x2, w1, b1, gamma, beta, w2, b2)
    assert out2.shape == (B2, PROJ)
    assert jnp.allclose(out2, ref2, atol=2e-2, rtol=2e-2), "two-pass mismatch"

    print("KERNEL_OK")
</pallas_src>

<mosaic_0001>
module attributes {stable_mosaic.version = 11 : i64} {
  func.func @_fused_kernel(%arg0: memref<8x128xbf16, #tpu.memory_space<vmem>>, %arg1: memref<128x128xbf16, #tpu.memory_space<vmem>>, %arg2: memref<1x128xf32, #tpu.memory_space<vmem>>, %arg3: memref<1x128xf32, #tpu.memory_space<vmem>>, %arg4: memref<1x128xf32, #tpu.memory_space<vmem>>, %arg5: memref<128x128xbf16, #tpu.memory_space<vmem>>, %arg6: memref<1x128xf32, #tpu.memory_space<vmem>>, %arg7: memref<8x128xf32, #tpu.memory_space<vmem>>) attributes {dimension_semantics = [], scalar_prefetch = 0 : i64, scratch_operands = 0 : i64, tpu.core_type = #tpu.core_type<tc>} {
    %c0 = arith.constant 0 : index
    %c0_0 = arith.constant 0 : index
    %0 = vector.load %arg0[%c0, %c0_0] : memref<8x128xbf16, #tpu.memory_space<vmem>>, vector<8x128xbf16>
    %c0_1 = arith.constant 0 : index
    %c0_2 = arith.constant 0 : index
    %1 = vector.load %arg1[%c0_1, %c0_2] : memref<128x128xbf16, #tpu.memory_space<vmem>>, vector<128x128xbf16>
    %cst = arith.constant dense<0.000000e+00> : vector<8x128xf32>
    %2 = tpu.matmul %0, %1, %cst {dimension_numbers = #tpu.dot_dimension_numbers<[1], [0], [0], [1], [0, 0, 1, 1], [], []>} : vector<8x128xbf16>, vector<128x128xbf16>, vector<8x128xf32> -> vector<8x128xf32>
    %c0_3 = arith.constant 0 : index
    %c0_4 = arith.constant 0 : index
    %3 = vector.load %arg2[%c0_3, %c0_4] : memref<1x128xf32, #tpu.memory_space<vmem>>, vector<1x128xf32>
    %4 = vector.broadcast %3 : vector<1x128xf32> to vector<8x128xf32>
    %5 = arith.addf %2, %4 : vector<8x128xf32>
    %cst_5 = arith.constant dense<0.000000e+00> : vector<128xf32>
    %6 = vector.multi_reduction <add>, %5, %cst_5 [0] : vector<8x128xf32> to vector<128xf32>
    %7 = vector.shape_cast %6 : vector<128xf32> to vector<1x128xf32>
    %8 = arith.mulf %5, %5 : vector<8x128xf32>
    %cst_6 = arith.constant dense<0.000000e+00> : vector<128xf32>
    %9 = vector.multi_reduction <add>, %8, %cst_6 [0] : vector<8x128xf32> to vector<128xf32>
    %10 = vector.shape_cast %9 : vector<128xf32> to vector<1x128xf32>
    %cst_7 = arith.constant 1.250000e-01 : f32
    %11 = vector.broadcast %cst_7 : f32 to vector<1x128xf32>
    %12 = arith.mulf %7, %11 : vector<1x128xf32>
    %cst_8 = arith.constant 1.250000e-01 : f32
    %13 = vector.broadcast %cst_8 : f32 to vector<1x128xf32>
    %14 = arith.mulf %10, %13 : vector<1x128xf32>
    %15 = arith.mulf %12, %12 : vector<1x128xf32>
    %16 = arith.subf %14, %15 : vector<1x128xf32>
    %cst_9 = arith.constant 0.000000e+00 : f32
    %17 = vector.broadcast %cst_9 : f32 to vector<1x128xf32>
    %18 = arith.maximumf %16, %17 : vector<1x128xf32>
    %c0_10 = arith.constant 0 : index
    %c0_11 = arith.constant 0 : index
    %19 = vector.load %arg3[%c0_10, %c0_11] : memref<1x128xf32, #tpu.memory_space<vmem>>, vector<1x128xf32>
    %cst_12 = arith.constant 9.99999974E-6 : f32
    %20 = vector.broadcast %cst_12 : f32 to vector<1x128xf32>
    %21 = arith.addf %18, %20 : vector<1x128xf32>
    %22 = math.rsqrt %21 : vector<1x128xf32>
    %23 = arith.mulf %19, %22 : vector<1x128xf32>
    %c0_13 = arith.constant 0 : index
    %c0_14 = arith.constant 0 : index
    %24 = vector.load %arg4[%c0_13, %c0_14] : memref<1x128xf32, #tpu.memory_space<vmem>>, vector<1x128xf32>
    %25 = arith.mulf %12, %23 : vector<1x128xf32>
    %26 = arith.subf %24, %25 : vector<1x128xf32>
    %27 = vector.broadcast %23 : vector<1x128xf32> to vector<8x128xf32>
    %28 = arith.mulf %5, %27 : vector<8x128xf32>
    %29 = vector.broadcast %26 : vector<1x128xf32> to vector<8x128xf32>
    %30 = arith.addf %28, %29 : vector<8x128xf32>
    %cst_15 = arith.constant 0.000000e+00 : f32
    %31 = vector.broadcast %cst_15 : f32 to vector<8x128xf32>
    %32 = arith.maximumf %30, %31 : vector<8x128xf32>
    %33 = arith.truncf %32 : vector<8x128xf32> to vector<8x128xbf16>
    %c0_16 = arith.constant 0 : index
    %c0_17 = arith.constant 0 : index
    %34 = vector.load %arg5[%c0_16, %c0_17] : memref<128x128xbf16, #tpu.memory_space<vmem>>, vector<128x128xbf16>
    %cst_18 = arith.constant dense<0.000000e+00> : vector<8x128xf32>
    %35 = tpu.matmul %33, %34, %cst_18 {dimension_numbers = #tpu.dot_dimension_numbers<[1], [0], [0], [1], [0, 0, 1, 1], [], []>} : vector<8x128xbf16>, vector<128x128xbf16>, vector<8x128xf32> -> vector<8x128xf32>
    %c0_19 = arith.constant 0 : index
    %c0_20 = arith.constant 0 : index
    %36 = vector.load %arg6[%c0_19, %c0_20] : memref<1x128xf32, #tpu.memory_space<vmem>>, vector<1x128xf32>
    %37 = vector.broadcast %36 : vector<1x128xf32> to vector<8x128xf32>
    %38 = arith.addf %35, %37 : vector<8x128xf32>
    %c0_21 = arith.constant 0 : index
    %c0_22 = arith.constant 0 : index
    %39 = vector.load %arg7[%c0_21, %c0_22] : memref<8x128xf32, #tpu.memory_space<vmem>>, vector<8x128xf32>
    tpu.vector_store %arg7[%c0_21, %c0_22], %38 {strides = array<i32>} : memref<8x128xf32, #tpu.memory_space<vmem>>, vector<8x128xf32>,
    return
  }
}

</mosaic_0001>

<llo_original>
// kernel: tpu_custom_call.1
$region0: #{tpu_custom_call.1}
  #allocation0 [shape = 'u32[]', space=smem, size = 0x4, offset = 0x4, fixed_abs, tag = 'smem constant byte address 0x4 - core index']
  #allocation1 [shape = 'u32[144,128]{1,0:T(1,128)}', space=vmem, size = 0x12000, scoped, tag = 'internal scratch']
  %s0 = inlined_call_operand.hbm [shape: bf16[8,128], index: 0, kind: input, shape index: {}]
  %s1 = inlined_call_operand.hbm [shape: bf16[128,128], index: 1, kind: input, shape index: {}]
  %s2 = inlined_call_operand.vmem [shape: f32[1,128], index: 2, kind: input, shape index: {}]
  %s3 = inlined_call_operand.vmem [shape: f32[1,128], index: 3, kind: input, shape index: {}]
  %s4 = inlined_call_operand.vmem [shape: f32[1,128], index: 4, kind: input, shape index: {}]
  %s5 = inlined_call_operand.hbm [shape: bf16[128,128], index: 5, kind: input, shape index: {}]
  %s6 = inlined_call_operand.vmem [shape: f32[1,128], index: 6, kind: input, shape index: {}]
  %s7 = inlined_call_operand.hbm [shape: f32[8,128], index: 7, kind: output, shape index: {}]
  %s8 = sld [smem:[#allocation0]]
  $region50: #{tpu_custom_call.1} parent=0
    _
  %s10 = ssub.s32 1, %s8
  %s11 = scalar_select 0, %s10, %s8
  $region1: #{tpu_custom_call.1} parent=0
    #allocation2 [shape = 'u8[2048]{0}', space=vmem, size = 0x800, scoped, tag = 'input window, operand 0, single buffered']
    #allocation3 [shape = 's32[1]{0}', space=sflag, size = 0x4, scoped, tag = 'scoped memory for tpu_custom_call.1']
    #allocation4 [shape = 's32[1]{0}', space=sflag, size = 0x4, scoped, tag = 'scoped memory for tpu_custom_call.1']
    #allocation5 [shape = 'u8[32768]{0}', space=vmem, size = 0x8000, scoped, tag = 'input window, operand 1, single buffered']
    #allocation6 [shape = 's32[1]{0}', space=sflag, size = 0x4, scoped, tag = 'scoped memory for tpu_custom_call.1']
    #allocation7 [shape = 'u8[32768]{0}', space=vmem, size = 0x8000, scoped, tag = 'input window, operand 5, single buffered']
    #allocation8 [shape = 'u8[4096]{0}', space=vmem, size = 0x1000, scoped, tag = 'output window, operand 0, single buffered']
    %12 = vsyncpa [#allocation3], 0
    %13 = vsyncpa [#allocation6], 0
    %14 = vsyncpa [#allocation4], 0
    // Predicated region
    $region2: #{tpu_custom_call.1} parent=1 // pred_check
      _
    $region3: #{tpu_custom_call.1} parent=1 // pred_check_branch
      %16 = sbr.rel (0) target = $region5
    $region4: #{tpu_custom_call.1} parent=1 // pred_region
      %s18 = ssub.s32 64, 64
      %19 = vsyncadd [#allocation3], %s18
      %s21 = sshll.u32 [#allocation2], 4
      %s22 = int_to_ptr.vmem [resolvable:$true] %s21
      %24 = dma.hbm_to_vmem [thread:$0]  %s0, 64, %s22, [#allocation3]
    $region5: #{tpu_custom_call.1} parent=1 // pred_fallthru
      _
    // Predicated region
    $region6: #{tpu_custom_call.1} parent=1 // pred_check
      _
    $region7: #{tpu_custom_call.1} parent=1 // pred_check_branch
      %26 = sbr.rel (0) target = $region9
    $region8: #{tpu_custom_call.1} parent=1 // pred_region
      %s28 = ssub.s32 1024, 1024
      %29 = vsyncadd [#allocation6], %s28
      %s30 = sshll.u32 [#allocation5], 4
      %s31 = int_to_ptr.vmem [resolvable:$true] %s30
      %36 = dma.hbm_to_vmem [thread:$0]  %s1, 1024, %s31, [#allocation6], 64, 64, 4
    $region9: #{tpu_custom_call.1} parent=1 // pred_fallthru
      _
    // Predicated region
    $region10: #{tpu_custom_call.1} parent=1 // pred_check
      _
    $region11: #{tpu_custom_call.1} parent=1 // pred_check_branch
      %38 = sbr.rel (0) target = $region13
    $region12: #{tpu_custom_call.1} parent=1 // pred_region
      _
    $region13: #{tpu_custom_call.1} parent=1 // pred_fallthru
      _
    // Predicated region
    $region14: #{tpu_custom_call.1} parent=1 // pred_check
      _
    $region15: #{tpu_custom_call.1} parent=1 // pred_check_branch
      %40 = sbr.rel (0) target = $region17
    $region16: #{tpu_custom_call.1} parent=1 // pred_region
      _
    $region17: #{tpu_custom_call.1} parent=1 // pred_fallthru
      _
    // Predicated region
    $region18: #{tpu_custom_call.1} parent=1 // pred_check
      _
    $region19: #{tpu_custom_call.1} parent=1 // pred_check_branch
      %42 = sbr.rel (0) target = $region21
    $region20: #{tpu_custom_call.1} parent=1 // pred_region
      _
    $region21: #{tpu_custom_call.1} parent=1 // pred_fallthru
      _
    // Predicated region
    $region22: #{tpu_custom_call.1} parent=1 // pred_check
      _
    $region23: #{tpu_custom_call.1} parent=1 // pred_check_branch
      %44 = sbr.rel (0) target = $region25
    $region24: #{tpu_custom_call.1} parent=1 // pred_region
      %s46 = ssub.s32 1024, 1024
      %47 = vsyncadd [#allocation6], %s46
      %s48 = sshll.u32 [#allocation7], 4
      %s49 = int_to_ptr.vmem [resolvable:$true] %s48
      %54 = dma.hbm_to_vmem [thread:$0]  %s5, 1024, %s49, [#allocation6], 64, 64, 4
    $region25: #{tpu_custom_call.1} parent=1 // pred_fallthru
      _
    // Predicated region
    $region26: #{tpu_custom_call.1} parent=1 // pred_check
      _
    $region27: #{tpu_custom_call.1} parent=1 // pred_check_branch
      %56 = sbr.rel (0) target = $region29
    $region28: #{tpu_custom_call.1} parent=1 // pred_region
      _
    $region29: #{tpu_custom_call.1} parent=1 // pred_fallthru
      _
    // Predicated region
    $region30: #{tpu_custom_call.1} parent=1 // pred_check
      _
    $region31: #{tpu_custom_call.1} parent=1 // pred_check_branch
      %58 = sbr.rel (0) target = $region33
    $region32: #{tpu_custom_call.1} parent=1 // pred_region
      %59 = dma.done [#allocation3], 64
    $region33: #{tpu_custom_call.1} parent=1 // pred_fallthru
      _
    // Predicated region
    $region34: #{tpu_custom_call.1} parent=1 // pred_check
      _
    $region35: #{tpu_custom_call.1} parent=1 // pred_check_branch
      %61 = sbr.rel (0) target = $region37
    $region36: #{tpu_custom_call.1} parent=1 // pred_region
      %62 = dma.done [#allocation6], 1024
    $region37: #{tpu_custom_call.1} parent=1 // pred_fallthru
      _
    // Predicated region
    $region38: #{tpu_custom_call.1} parent=1 // pred_check
      _
    $region39: #{tpu_custom_call.1} parent=1 // pred_check_branch
      %64 = sbr.rel (0) target = $region41
    $region40: #{tpu_custom_call.1} parent=1 // pred_region
      %65 = dma.done [#allocation6], 1024
    $region41: #{tpu_custom_call.1} parent=1 // pred_fallthru
      _
    %v67 = vld [vmem:[#allocation2] sm:$0xf]
    %v68 = vld [vmem:[#allocation5] sm:$0xf]
    %v69 = vld [vmem:[#allocation5 + $0x4] sm:$0xf]
    %v70 = vld [vmem:[#allocation5 + $0x8] sm:$0xf]
    %v71 = vld [vmem:[#allocation5 + $0xc] sm:$0xf]
    %v72 = vld [vmem:[#allocation5 + $0x10] sm:$0xf]
    %v73 = vld [vmem:[#allocation5 + $0x14] sm:$0xf]
    %v74 = vld [vmem:[#allocation5 + $0x18] sm:$0xf]
    %v75 = vld [vmem:[#allocation5 + $0x1c] sm:$0xf]
    %v76 = vld [vmem:[#allocation5 + $0x20] sm:$0xf]
    %v77 = vld [vmem:[#allocation5 + $0x24] sm:$0xf]
    %v78 = vld [vmem:[#allocation5 + $0x28] sm:$0xf]
    %v79 = vld [vmem:[#allocation5 + $0x2c] sm:$0xf]
    %v80 = vld [vmem:[#allocation5 + $0x30] sm:$0xf]
    %v81 = vld [vmem:[#allocation5 + $0x34] sm:$0xf]
    %v82 = vld [vmem:[#allocation5 + $0x38] sm:$0xf]
    %v83 = vld [vmem:[#allocation5 + $0x3c] sm:$0xf]
    %v84 = vld [vmem:[%s2] sm:$0x1]
    %v86 = vlaneseq
    %v87 = vshrl.u32 %v86, 7
    %v88 = vsub.s32 0, %v87
    %v89 = vrot.slane %v84, %v88
    %v107 = vunpack.c.l.b16 %v68
    %v108 = vunpack.c.l.b16 %v69
    %v109 = vunpack.c.l.b16 %v70
    %v110 = vunpack.c.l.b16 %v71
    %v111 = vunpack.c.l.b16 %v72
    %v112 = vunpack.c.l.b16 %v73
    %v113 = vunpack.c.l.b16 %v74
    %v114 = vunpack.c.l.b16 %v75
    %v115 = vunpack.c.l.b16 %v76
    %v116 = vunpack.c.l.b16 %v77
    %v117 = vunpack.c.l.b16 %v78
    %v118 = vunpack.c.l.b16 %v79
    %v119 = vunpack.c.l.b16 %v80
    %v120 = vunpack.c.l.b16 %v81
    %v121 = vunpack.c.l.b16 %v82
    %v122 = vunpack.c.l.b16 %v83
    %v123 = vpack.c.b16 %v108, %v107
    %v124 = vpack.c.b16 %v110, %v109
    %v125 = vpack.c.b16 %v112, %v111
    %v126 = vpack.c.b16 %v114, %v113
    %v127 = vpack.c.b16 %v116, %v115
    %v128 = vpack.c.b16 %v118, %v117
    %v129 = vpack.c.b16 %v120, %v119
    %v130 = vpack.c.b16 %v122, %v121
    %139 = vmatprep.subr.bf16.mxu0 0
    %140 = vmatpush1.bf16.msra.mxu0 %v123
    %141 = vmatprep.subr.bf16.mxu0 0
    %142 = vmatpush1.bf16.msra.mxu0 %v124
    %143 = vmatprep.subr.bf16.mxu0 0
    %144 = vmatpush1.bf16.msra.mxu0 %v125
    %145 = vmatprep.subr.bf16.mxu0 0
    %146 = vmatpush1.bf16.msra.mxu0 %v126
    %147 = vmatprep.subr.bf16.mxu0 0
    %148 = vmatpush1.bf16.msra.mxu0 %v127
    %149 = vmatprep.subr.bf16.mxu0 0
    %150 = vmatpush1.bf16.msra.mxu0 %v128
    %151 = vmatprep.subr.bf16.mxu0 0
    %152 = vmatpush1.bf16.msra.mxu0 %v129
    %153 = vmatprep.subr.bf16.mxu0 0
    %154 = vmatpush1.bf16.msra.mxu0 %v130
    %155 = vmatprep.subr.bf16.mxu0 0
    %156 = vmatpush1.bf16.msra.mxu0 0
    %157 = vmatprep.subr.bf16.mxu0 0
    %158 = vmatpush1.bf16.msra.mxu0 0
    %159 = vmatprep.subr.bf16.mxu0 0
    %160 = vmatpush1.bf16.msra.mxu0 0
    %161 = vmatprep.subr.bf16.mxu0 0
    %162 = vmatpush1.bf16.msra.mxu0 0
    %163 = vmatprep.subr.bf16.mxu0 0
    %164 = vmatpush1.bf16.msra.mxu0 0
    %165 = vmatprep.subr.bf16.mxu0 0
    %166 = vmatpush1.bf16.msra.mxu0 0
    %167 = vmatprep.subr.bf16.mxu0 0
    %168 = vmatpush1.bf16.msra.mxu0 0
    %169 = vmatprep.subr.bf16.mxu0 0
    %170 = vmatpush1.bf16.msra.mxu0 0
    %171 = vmatprep.mubr.bf16.mxu0 0
    %172 = vmatmul.mubr.bf16.gmra.mrb[0].mxu0 %v67
    %v173 = vpop.f32.mrb[0].mxu0
    %v174 = vadd.f32 %v89, %v173
    %v175 = vpop.f32.mrb[0].mxu0
    %v176 = vpop.f32.mrb[0].mxu0
    %v177 = vpop.f32.mrb[0].mxu0
    %178 = vdwg.mxu0
    %v179 = vrot.slane %v174, 4
    %v180 = vadd.f32 %v174, %v179
    %v181 = vrot.slane %v180, 2
    %v182 = vadd.f32 %v180, %v181
    %v183 = vrot.slane %v182, 1
    %v184 = vadd.f32 %v182, %v183
    %v185 = vmul.f32 %v174, %v174
    %v186 = vrot.slane %v185, 4
    %v187 = vadd.f32 %v185, %v186
    %v188 = vrot.slane %v187, 2
    %v189 = vadd.f32 %v187, %v188
    %v190 = vrot.slane %v189, 1
    %v191 = vadd.f32 %v189, %v190
    %v192 = vmul.f32 %v184, 0.125
    %v193 = vmul.f32 %v191, 0.125
    %v194 = vmul.f32 %v192, %v192
    %v195 = vsub.f32 %v193, %v194
    %v196 = vmax.f32 %v195, 0.0
    %v197 = vld [vmem:[%s3] sm:$0x1]
    %v198 = vadd.f32 %v196, 1e-05
    %v199 = vrsqrt.pop %v198
    %v200 = vmul.f32 %v197, %v199
    %v201 = vld [vmem:[%s4] sm:$0x1]
    %v202 = vmul.f32 %v192, %v200
    %v203 = vsub.f32 %v201, %v202
    %v205 = vlaneseq
    %v206 = vshrl.u32 %v205, 7
    %v207 = vsub.s32 0, %v206
    %v208 = vrot.slane %v200, %v207
    %v210 = vmul.f32 %v174, %v208
    %v212 = vlaneseq
    %v213 = vshrl.u32 %v212, 7
    %v214 = vsub.s32 0, %v213
    %v215 = vrot.slane %v203, %v214
    %v217 = vadd.f32 %v210, %v215
    %v218 = vmax.f32 %v217, 0.0
    %v219 = vpack.c.bf16 %v218, %v218
    %v220 = vld [vmem:[#allocation7] sm:$0xf]
    %v221 = vld [vmem:[#allocation7 + $0x4] sm:$0xf]
    %v222 = vld [vmem:[#allocation7 + $0x8] sm:$0xf]
    %v223 = vld [vmem:[#allocation7 + $0xc] sm:$0xf]
    %v224 = vld [vmem:[#allocation7 + $0x10] sm:$0xf]
    %v225 = vld [vmem:[#allocation7 + $0x14] sm:$0xf]
    %v226 = vld [vmem:[#allocation7 + $0x18] sm:$0xf]
    %v227 = vld [vmem:[#allocation7 + $0x1c] sm:$0xf]
    %v228 = vld [vmem:[#allocation7 + $0x20] sm:$0xf]
    %v229 = vld [vmem:[#allocation7 + $0x24] sm:$0xf]
    %v230 = vld [vmem:[#allocation7 + $0x28] sm:$0xf]
    %v231 = vld [vmem:[#allocation7 + $0x2c] sm:$0xf]
    %v232 = vld [vmem:[#allocation7 + $0x30] sm:$0xf]
    %v233 = vld [vmem:[#allocation7 + $0x34] sm:$0xf]
    %v234 = vld [vmem:[#allocation7 + $0x38] sm:$0xf]
    %v235 = vld [vmem:[#allocation7 + $0x3c] sm:$0xf]
    %v236 = vld [vmem:[%s6] sm:$0x1]
    %v238 = vlaneseq
    %v239 = vshrl.u32 %v238, 7
    %v240 = vsub.s32 0, %v239
    %v241 = vrot.slane %v236, %v240
    %v259 = vunpack.c.l.b16 %v220
    %v260 = vunpack.c.l.b16 %v221
    %v261 = vunpack.c.l.b16 %v222
    %v262 = vunpack.c.l.b16 %v223
    %v263 = vunpack.c.l.b16 %v224
    %v264 = vunpack.c.l.b16 %v225
    %v265 = vunpack.c.l.b16 %v226
    %v266 = vunpack.c.l.b16 %v227
    %v267 = vunpack.c.l.b16 %v228
    %v268 = vunpack.c.l.b16 %v229
    %v269 = vunpack.c.l.b16 %v230
    %v270 = vunpack.c.l.b16 %v231
    %v271 = vunpack.c.l.b16 %v232
    %v272 = vunpack.c.l.b16 %v233
    %v273 = vunpack.c.l.b16 %v234
    %v274 = vunpack.c.l.b16 %v235
    %v275 = vpack.c.b16 %v260, %v259
    %v276 = vpack.c.b16 %v262, %v261
    %v277 = vpack.c.b16 %v264, %v263
    %v278 = vpack.c.b16 %v266, %v265
    %v279 = vpack.c.b16 %v268, %v267
    %v280 = vpack.c.b16 %v270, %v269
    %v281 = vpack.c.b16 %v272, %v271
    %v282 = vpack.c.b16 %v274, %v273
    %291 = vmatprep.subr.bf16.mxu0 0
    %292 = vmatpush1.bf16.msra.mxu0 %v275
    %293 = vmatprep.subr.bf16.mxu0 0
    %294 = vmatpush1.bf16.msra.mxu0 %v276
    %295 = vmatprep.subr.bf16.mxu0 0
    %296 = vmatpush1.bf16.msra.mxu0 %v277
    %297 = vmatprep.subr.bf16.mxu0 0
    %298 = vmatpush1.bf16.msra.mxu0 %v278
    %299 = vmatprep.subr.bf16.mxu0 0
    %300 = vmatpush1.bf16.msra.mxu0 %v279
    %301 = vmatprep.subr.bf16.mxu0 0
    %302 = vmatpush1.bf16.msra.mxu0 %v280
    %303 = vmatprep.subr.bf16.mxu0 0
    %304 = vmatpush1.bf16.msra.mxu0 %v281
    %305 = vmatprep.subr.bf16.mxu0 0
    %306 = vmatpush1.bf16.msra.mxu0 %v282
    %307 = vmatprep.subr.bf16.mxu0 0
    %308 = vmatpush1.bf16.msra.mxu0 0
    %309 = vmatprep.subr.bf16.mxu0 0
    %310 = vmatpush1.bf16.msra.mxu0 0
    %311 = vmatprep.subr.bf16.mxu0 0
    %312 = vmatpush1.bf16.msra.mxu0 0
    %313 = vmatprep.subr.bf16.mxu0 0
    %314 = vmatpush1.bf16.msra.mxu0 0
    %315 = vmatprep.subr.bf16.mxu0 0
    %316 = vmatpush1.bf16.msra.mxu0 0
    %317 = vmatprep.subr.bf16.mxu0 0
    %318 = vmatpush1.bf16.msra.mxu0 0
    %319 = vmatprep.subr.bf16.mxu0 0
    %320 = vmatpush1.bf16.msra.mxu0 0
    %321 = vmatprep.subr.bf16.mxu0 0
    %322 = vmatpush1.bf16.msra.mxu0 0
    %323 = vmatprep.mubr.bf16.mxu0 0
    %324 = vmatmul.mubr.bf16.gmra.mrb[0].mxu0 %v219
    %v325 = vpop.f32.mrb[0].mxu0
    %v326 = vadd.f32 %v241, %v325
    %v327 = vpop.f32.mrb[0].mxu0
    %v328 = vpop.f32.mrb[0].mxu0
    %v329 = vpop.f32.mrb[0].mxu0
    %330 = vdwg.mxu0
    %331 = vst [vmem:[#allocation8] sm:$0xff] %v326
    // Predicated region
    $region42: #{tpu_custom_call.1} parent=1 // pred_check
      _
    $region43: #{tpu_custom_call.1} parent=1 // pred_check_branch
      %333 = sbr.rel (0) target = $region45
    $region44: #{tpu_custom_call.1} parent=1 // pred_region
      %s335 = ssub.s32 128, 128
      %336 = vsyncadd [#allocation4], %s335
      %s338 = sshll.u32 [#allocation8], 4
      %s339 = int_to_ptr.vmem [resolvable:$true] %s338
      %341 = dma.vmem_to_hbm [thread:$0]  %s339, 128, %s7, [#allocation4]
    $region45: #{tpu_custom_call.1} parent=1 // pred_fallthru
      _
    // Predicated region
    $region46: #{tpu_custom_call.1} parent=1 // pred_check
      _
    $region47: #{tpu_custom_call.1} parent=1 // pred_check_branch
      %343 = sbr.rel (0) target = $region49
    $region48: #{tpu_custom_call.1} parent=1 // pred_region
      %344 = dma.done [#allocation4], 128
    $region49: #{tpu_custom_call.1} parent=1 // pred_fallthru
      _
    %345 = vsyncpa [#allocation3], 1
    %346 = vsyncpa [#allocation6], 1
    %347 = vsyncpa [#allocation4], 1

</llo_original>
